<compile_context>
chip_gen: v7x
topology: tpu7x:2x2x1
jax: 0.10.0
libtpu: 0.0.40
codegen_flags: <defaults>
</compile_context>

<pallas_src>
import functools

import numpy as np
import jax
import jax.numpy as jnp
from jax.experimental import pallas as pl
from jax.experimental.pallas import tpu as pltpu


def coord_attention_kernel(x_ref, pool_ref, eh_ref, ew_ref, w1_ref,
                           bns_ref, bnb_ref, wh_ref, bh_ref, ww_ref, bw_ref,
                           o_ref, *, bn, c):
    f32 = jnp.float32
    x = x_ref[...]                                   # (bn*c, HW), I/O dtype (f32/bf16)

    # Coordinate pooling for all bn*c rows in one MXU matmul (f32 accumulate):
    #   y[:, :h]  = mean over W,  y[:, h:] = mean over H.
    y = jnp.dot(x, pool_ref[...], preferred_element_type=f32)        # (bn*c, H+W)

    w1 = w1_ref[...]
    bns = bns_ref[...]
    bnb = bnb_ref[...]
    wh = wh_ref[...]
    bh = bh_ref[...]
    ww = ww_ref[...]
    bw = bw_ref[...]

    # Tiny per-sample pointwise convs (channel mixing is per batch element).
    a_h_rows = []
    a_w_rows = []
    for b in range(bn):
        yb = y[b * c:(b + 1) * c, :]                                  # (C, H+W)
        # conv1 (1x1) -> BN (eval, conv1 bias folded into shift) -> h_swish
        y1 = jnp.dot(w1, yb, preferred_element_type=f32)              # (MIP, H+W)
        y1 = y1 * bns + bnb
        y1 = y1 * (jnp.clip(y1 + 3.0, 0.0, 6.0) * (1.0 / 6.0))        # h_swish
        # conv_h / conv_w (1x1) -> sigmoid, applied to the full H+W axis; the
        # h/w split is absorbed by the zero-padded expansion matrices below.
        a_h_rows.append(jax.nn.sigmoid(
            jnp.dot(wh, y1, preferred_element_type=f32) + bh))        # (C, H+W)
        a_w_rows.append(jax.nn.sigmoid(
            jnp.dot(ww, y1, preferred_element_type=f32) + bw))        # (C, H+W)

    a_h = a_h_rows[0] if bn == 1 else jnp.concatenate(a_h_rows, axis=0)
    a_w = a_w_rows[0] if bn == 1 else jnp.concatenate(a_w_rows, axis=0)

    # Broadcast gates back to the lane-dense (bn*c, HW) layout via expansion
    # matmuls (each output element is exactly one gate value, so accumulating
    # in the I/O dtype is exact per element), then one fused multiply + store.
    cd = x.dtype
    gate_h = jnp.dot(a_h.astype(cd), eh_ref[...], preferred_element_type=cd)
    gate_w = jnp.dot(a_w.astype(cd), ew_ref[...], preferred_element_type=cd)
    o_ref[...] = (x * (gate_h * gate_w)).astype(o_ref.dtype)


def _choose_block_batch(n, c, hw, itemsize, target_bytes=2 << 20, max_unroll=16):
    """Pick Bn = batch elements per grid step.

    Constraints: Bn | N, and Bn*C % 8 == 0 (full sublanes) unless Bn == N
    (full-array block is always legal). Preferences: block <= ~2 MiB, per-step
    unroll <= max_unroll, and an even grid length when it does not shrink the
    block (v7x shards a "parallel" grid axis across its 2 TensorCores).
    """
    valid = [bn for bn in range(1, n + 1)
             if n % bn == 0 and ((bn * c) % 8 == 0 or bn == n)]
    if not valid:
        return n
    fitting = [bn for bn in valid
               if bn <= max_unroll and bn * c * hw * itemsize <= target_bytes]
    if not fitting:
        return min(valid)
    even = [bn for bn in fitting if (n // bn) % 2 == 0]
    return max(even) if even else max(fitting)


def _vmem_cap_bytes():
    """Generation-aware scoped-VMEM cap (~3/4 of physical VMEM)."""
    try:
        phys = int(pltpu.get_tpu_info().vmem_capacity_bytes)
    except Exception:
        phys = 64 << 20          # conservative: v7x per-TensorCore VMEM
    return (phys * 3) // 4       # 48 MiB on v7x, 96 MiB on v5e/v6e


def coord_attention(x, params):
    n, c, h, w = x.shape
    w1, b1, bn_scale, bn_shift, wh, bh, ww, bw = params
    mip, oup = w1.shape[0], wh.shape[0]
    if oup != c:
        raise ValueError("CoordAttention multiplies the identity by the gate: "
                         "oup must equal inp (== C).")

    hw = h * w
    hpw = h + w
    f32 = jnp.float32
    cdtype = x.dtype                     # compute dtype of the lane-dense tensors
    itemsize = jnp.dtype(cdtype).itemsize

    x2d = x.reshape(n * c, hw)           # (rows, HW): lane-dense spatial axis

    # Constant pooling / expansion matrices (numpy -> constants under jit).
    # eh: rows 0..h-1 select the row index of each spatial position; the w-half
    # rows are zero (and vice versa for ew), so the h/w split needs no slices.
    cols = np.arange(hw)
    eh_np = np.zeros((hpw, hw), np.float32)
    eh_np[:h, :] = (cols[None, :] // w == np.arange(h)[:, None])
    ew_np = np.zeros((hpw, hw), np.float32)
    ew_np[h:, :] = (cols[None, :] % w == np.arange(w)[:, None])
    pool_np = (eh_np / w + ew_np / h).T                    # (HW, H+W)

    pool = jnp.asarray(pool_np, dtype=cdtype)
    eh = jnp.asarray(eh_np, dtype=cdtype)
    ew = jnp.asarray(ew_np, dtype=cdtype)

    # Fold conv1 bias into the BN shift: (conv(x)+b)*s + t == conv(x)*s + (b*s+t)
    bns = bn_scale.astype(f32).reshape(mip, 1)
    bnb = b1.astype(f32).reshape(mip, 1) * bns + bn_shift.astype(f32).reshape(mip, 1)

    bn_blk = _choose_block_batch(n, c, hw, itemsize)
    rows_blk = bn_blk * c
    grid_len = n // bn_blk

    kernel = functools.partial(coord_attention_kernel, bn=bn_blk, c=c)

    def full_spec(arr):
        nd = arr.ndim
        return pl.BlockSpec(tuple(arr.shape), lambda i, _nd=None: (0,) * nd)

    # VMEM budget: double-buffered in/out blocks + (double-buffered) constant
    # operands + in-kernel temporaries (gate_h/gate_w/gate + small pooled
    # activations), plus slack for Mosaic internal scratch.
    block_bytes = rows_blk * hw * itemsize
    const_bytes = (pool.size + eh.size + ew.size) * itemsize
    temp_bytes = (3 * rows_blk * hw + 4 * rows_blk * hpw) * 4
    needed = 4 * block_bytes + 2 * const_bytes + temp_bytes + (2 << 20)
    vmem_limit = int(min(max(needed, 32 << 20), _vmem_cap_bytes()))

    out2d = pl.pallas_call(
        kernel,
        out_shape=jax.ShapeDtypeStruct((n * c, hw), x.dtype),
        grid_spec=pltpu.PrefetchScalarGridSpec(
            num_scalar_prefetch=0,
            grid=(grid_len,),
            in_specs=[
                pl.BlockSpec((rows_blk, hw), lambda i: (i, 0)),   # x (lane-dense)
                full_spec(pool),       # pooling matrix (HW, H+W)
                full_spec(eh),         # row-gate expansion (H+W, HW), zero-padded
                full_spec(ew),         # col-gate expansion (H+W, HW), zero-padded
                full_spec(w1),         # conv1 weight (MIP, C)
                full_spec(bns),        # BN scale (MIP, 1)
                full_spec(bnb),        # BN shift + folded conv1 bias (MIP, 1)
                full_spec(wh),         # conv_h weight (C, MIP)
                full_spec(bh.reshape(oup, 1)),   # conv_h bias
                full_spec(ww),         # conv_w weight (C, MIP)
                full_spec(bw.reshape(oup, 1)),   # conv_w bias
            ],
            out_specs=pl.BlockSpec((rows_blk, hw), lambda i: (i, 0)),
        ),
        compiler_params=pltpu.CompilerParams(
            dimension_semantics=("parallel",),
            vmem_limit_bytes=vmem_limit),
    )(x2d, pool, eh, ew,
      w1.astype(f32), bns, bnb,
      wh.astype(f32), bh.reshape(oup, 1).astype(f32),
      ww.astype(f32), bw.reshape(oup, 1).astype(f32))

    return out2d.reshape(n, c, h, w)


def coord_attention_ref(x, params):
    """Pure-JAX reference mirroring the PyTorch forward (eval-mode BN)."""
    w1, b1, bns, bnb, wh, bh, ww, bw = params
    n, c, h, w = x.shape
    x_h = jnp.mean(x, axis=3)                        # (n, c, h)
    x_w = jnp.mean(x, axis=2)                        # (n, c, w)
    y = jnp.concatenate([x_h, x_w], axis=2)          # (n, c, h+w)
    y1 = jnp.einsum('mc,nck->nmk', w1, y) + b1[None]
    y1 = y1 * bns[None] + bnb[None]
    y1 = y1 * jnp.clip(y1 + 3.0, 0.0, 6.0) / 6.0
    yh, yw = y1[:, :, :h], y1[:, :, h:]
    a_h = jax.nn.sigmoid(jnp.einsum('om,nmk->nok', wh, yh) + bh[None])
    a_w = jax.nn.sigmoid(jnp.einsum('om,nmk->nok', ww, yw) + bw[None])
    return x * a_w[:, :, None, :] * a_h[:, :, :, None]


if __name__ == "__main__":
    # Module config (small, consistent with CoordAttention(inp=4, oup=4, reduction=32))
    N, C, H, W = 2, 4, 16, 16
    INP, OUP, REDUCTION = C, C, 32
    MIP = max(8, INP // REDUCTION)   # = 8
    EPS = 1e-5

    key = jax.random.PRNGKey(0)
    ks = jax.random.split(key, 12)

    x = jax.random.normal(ks[0], (N, C, H, W), dtype=jnp.float32)

    # Deterministic synthetic parameters (shapes match the nn.Module __init__).
    w1 = jax.random.normal(ks[1], (MIP, INP), dtype=jnp.float32) * 0.2   # conv1 (1x1)
    b1 = jax.random.normal(ks[2], (MIP, 1), dtype=jnp.float32) * 0.1
    # BatchNorm2d(MIP) in eval-mode semantics (running stats). TODO(synk): PyTorch
    # default train-mode BN uses batch statistics; eval semantics implemented here.
    gamma = 1.0 + 0.1 * jax.random.normal(ks[3], (MIP, 1), dtype=jnp.float32)
    beta = 0.1 * jax.random.normal(ks[4], (MIP, 1), dtype=jnp.float32)
    run_mean = 0.1 * jax.random.normal(ks[5], (MIP, 1), dtype=jnp.float32)
    run_var = jax.random.uniform(ks[6], (MIP, 1), dtype=jnp.float32,
                                 minval=0.5, maxval=1.5)
    bn_scale = gamma / jnp.sqrt(run_var + EPS)
    bn_shift = beta - run_mean * bn_scale

    wh = jax.random.normal(ks[7], (OUP, MIP), dtype=jnp.float32) * 0.2   # conv_h (1x1)
    bh = jax.random.normal(ks[8], (OUP, 1), dtype=jnp.float32) * 0.1
    ww = jax.random.normal(ks[9], (OUP, MIP), dtype=jnp.float32) * 0.2   # conv_w (1x1)
    bw = jax.random.normal(ks[10], (OUP, 1), dtype=jnp.float32) * 0.1

    params = (w1, b1, bn_scale, bn_shift, wh, bh, ww, bw)

    # jit the wrapper so the constant pooling/expansion matrices and the
    # weight-cast / bias-fold ops constant-fold / fuse (perf-review item).
    coord_attention_jit = jax.jit(coord_attention)

    # f32 path (strict check vs reference)
    out = jax.block_until_ready(coord_attention_jit(x, params))
    ref = coord_attention_ref(x, params)
    assert out.shape == (N, C, H, W)
    assert jnp.allclose(out, ref, rtol=1e-4, atol=1e-4), "f32 mismatch vs reference"

    # bf16 I/O path (halves HBM traffic for this memory-bound op; accumulation
    # stays f32 on the MXU, no full-block f32 materialization in the kernel).
    out_bf16 = jax.block_until_ready(coord_attention_jit(x.astype(jnp.bfloat16), params))
    assert out_bf16.dtype == jnp.bfloat16
    assert jnp.allclose(out_bf16.astype(jnp.float32), ref, rtol=5e-2, atol=5e-2), \
        "bf16 mismatch vs reference"

    print("KERNEL_OK")
</pallas_src>

<mosaic_0001>
module attributes {stable_mosaic.version = 11 : i64} {
  func.func @coord_attention_kernel(%arg0: i32, %arg1: memref<8x256xf32, #tpu.memory_space<vmem>>, %arg2: memref<256x32xf32, #tpu.memory_space<vmem>>, %arg3: memref<32x256xf32, #tpu.memory_space<vmem>>, %arg4: memref<32x256xf32, #tpu.memory_space<vmem>>, %arg5: memref<8x4xf32, #tpu.memory_space<vmem>>, %arg6: memref<8x1xf32, #tpu.memory_space<vmem>>, %arg7: memref<8x1xf32, #tpu.memory_space<vmem>>, %arg8: memref<4x8xf32, #tpu.memory_space<vmem>>, %arg9: memref<4x1xf32, #tpu.memory_space<vmem>>, %arg10: memref<4x8xf32, #tpu.memory_space<vmem>>, %arg11: memref<4x1xf32, #tpu.memory_space<vmem>>, %arg12: memref<8x256xf32, #tpu.memory_space<vmem>>) attributes {dimension_semantics = [#tpu.dimension_semantics<parallel>], iteration_bounds = array<i64: 1>, scalar_prefetch = 0 : i64, scratch_operands = 0 : i64, tpu.core_type = #tpu.core_type<tc>, window_params = [{transform_indices = @transform_0, window_bounds = array<i64: 8, 256>}, {pipeline_mode = #tpu.pipeline_mode<synchronous>, transform_indices = @transform_1, window_bounds = array<i64: 256, 32>}, {pipeline_mode = #tpu.pipeline_mode<synchronous>, transform_indices = @transform_2, window_bounds = array<i64: 32, 256>}, {pipeline_mode = #tpu.pipeline_mode<synchronous>, transform_indices = @transform_3, window_bounds = array<i64: 32, 256>}, {pipeline_mode = #tpu.pipeline_mode<synchronous>, transform_indices = @transform_4, window_bounds = array<i64: 8, 4>}, {pipeline_mode = #tpu.pipeline_mode<synchronous>, transform_indices = @transform_5, window_bounds = array<i64: 8, 1>}, {pipeline_mode = #tpu.pipeline_mode<synchronous>, transform_indices = @transform_6, window_bounds = array<i64: 8, 1>}, {pipeline_mode = #tpu.pipeline_mode<synchronous>, transform_indices = @transform_7, window_bounds = array<i64: 4, 8>}, {pipeline_mode = #tpu.pipeline_mode<synchronous>, transform_indices = @transform_8, window_bounds = array<i64: 4, 1>}, {pipeline_mode = #tpu.pipeline_mode<synchronous>, transform_indices = @transform_9, window_bounds = array<i64: 4, 8>}, {pipeline_mode = #tpu.pipeline_mode<synchronous>, transform_indices = @transform_10, window_bounds = array<i64: 4, 1>}, {transform_indices = @transform_11, window_bounds = array<i64: 8, 256>}]} {
    %c0 = arith.constant 0 : index
    %c0_0 = arith.constant 0 : index
    %0 = vector.load %arg1[%c0, %c0_0] : memref<8x256xf32, #tpu.memory_space<vmem>>, vector<8x256xf32>
    %c0_1 = arith.constant 0 : index
    %c0_2 = arith.constant 0 : index
    %1 = vector.load %arg2[%c0_1, %c0_2] : memref<256x32xf32, #tpu.memory_space<vmem>>, vector<256x32xf32>
    %cst = arith.constant dense<0.000000e+00> : vector<8x32xf32>
    %2 = tpu.matmul %0, %1, %cst {dimension_numbers = #tpu.dot_dimension_numbers<[1], [0], [0], [1], [0, 0, 1, 1], [], []>} : vector<8x256xf32>, vector<256x32xf32>, vector<8x32xf32> -> vector<8x32xf32>
    %c0_3 = arith.constant 0 : index
    %c0_4 = arith.constant 0 : index
    %3 = vector.load %arg5[%c0_3, %c0_4] : memref<8x4xf32, #tpu.memory_space<vmem>>, vector<8x4xf32>
    %c0_5 = arith.constant 0 : index
    %c0_6 = arith.constant 0 : index
    %4 = vector.load %arg6[%c0_5, %c0_6] : memref<8x1xf32, #tpu.memory_space<vmem>>, vector<8x1xf32>
    %c0_7 = arith.constant 0 : index
    %c0_8 = arith.constant 0 : index
    %5 = vector.load %arg7[%c0_7, %c0_8] : memref<8x1xf32, #tpu.memory_space<vmem>>, vector<8x1xf32>
    %c0_9 = arith.constant 0 : index
    %c0_10 = arith.constant 0 : index
    %6 = vector.load %arg8[%c0_9, %c0_10] : memref<4x8xf32, #tpu.memory_space<vmem>>, vector<4x8xf32>
    %c0_11 = arith.constant 0 : index
    %c0_12 = arith.constant 0 : index
    %7 = vector.load %arg9[%c0_11, %c0_12] : memref<4x1xf32, #tpu.memory_space<vmem>>, vector<4x1xf32>
    %c0_13 = arith.constant 0 : index
    %c0_14 = arith.constant 0 : index
    %8 = vector.load %arg10[%c0_13, %c0_14] : memref<4x8xf32, #tpu.memory_space<vmem>>, vector<4x8xf32>
    %c0_15 = arith.constant 0 : index
    %c0_16 = arith.constant 0 : index
    %9 = vector.load %arg11[%c0_15, %c0_16] : memref<4x1xf32, #tpu.memory_space<vmem>>, vector<4x1xf32>
    %10 = vector.extract_strided_slice %2 {offsets = [0, 0], sizes = [4, 32], strides = [1, 1]} : vector<8x32xf32> to vector<4x32xf32>
    %cst_17 = arith.constant dense<0.000000e+00> : vector<8x32xf32>
    %11 = tpu.matmul %3, %10, %cst_17 {dimension_numbers = #tpu.dot_dimension_numbers<[1], [0], [0], [1], [0, 0, 1, 1], [], []>} : vector<8x4xf32>, vector<4x32xf32>, vector<8x32xf32> -> vector<8x32xf32>
    %12 = vector.broadcast %4 : vector<8x1xf32> to vector<8x32xf32>
    %13 = arith.mulf %11, %12 : vector<8x32xf32>
    %14 = vector.broadcast %5 : vector<8x1xf32> to vector<8x32xf32>
    %15 = arith.addf %13, %14 : vector<8x32xf32>
    %cst_18 = arith.constant 3.000000e+00 : f32
    %16 = vector.broadcast %cst_18 : f32 to vector<8x32xf32>
    %17 = arith.addf %15, %16 : vector<8x32xf32>
    %cst_19 = arith.constant 0.000000e+00 : f32
    %cst_20 = arith.constant 6.000000e+00 : f32
    %18 = vector.broadcast %cst_19 : f32 to vector<8x32xf32>
    %19 = arith.maximumf %18, %17 : vector<8x32xf32>
    %20 = vector.broadcast %cst_20 : f32 to vector<8x32xf32>
    %21 = arith.minimumf %20, %19 : vector<8x32xf32>
    %cst_21 = arith.constant 0.166666672 : f32
    %22 = vector.broadcast %cst_21 : f32 to vector<8x32xf32>
    %23 = arith.mulf %21, %22 : vector<8x32xf32>
    %24 = arith.mulf %15, %23 : vector<8x32xf32>
    %cst_22 = arith.constant dense<0.000000e+00> : vector<4x32xf32>
    %25 = tpu.matmul %6, %24, %cst_22 {dimension_numbers = #tpu.dot_dimension_numbers<[1], [0], [0], [1], [0, 0, 1, 1], [], []>} : vector<4x8xf32>, vector<8x32xf32>, vector<4x32xf32> -> vector<4x32xf32>
    %26 = vector.broadcast %7 : vector<4x1xf32> to vector<4x32xf32>
    %27 = arith.addf %25, %26 : vector<4x32xf32>
    %28 = arith.negf %27 : vector<4x32xf32>
    %29 = math.exp %28 : vector<4x32xf32>
    %cst_23 = arith.constant 1.000000e+00 : f32
    %30 = vector.broadcast %cst_23 : f32 to vector<4x32xf32>
    %31 = arith.addf %30, %29 : vector<4x32xf32>
    %32 = arith.divf %30, %31 : vector<4x32xf32>
    %cst_24 = arith.constant dense<0.000000e+00> : vector<4x32xf32>
    %33 = tpu.matmul %8, %24, %cst_24 {dimension_numbers = #tpu.dot_dimension_numbers<[1], [0], [0], [1], [0, 0, 1, 1], [], []>} : vector<4x8xf32>, vector<8x32xf32>, vector<4x32xf32> -> vector<4x32xf32>
    %34 = vector.broadcast %9 : vector<4x1xf32> to vector<4x32xf32>
    %35 = arith.addf %33, %34 : vector<4x32xf32>
    %36 = arith.negf %35 : vector<4x32xf32>
    %37 = math.exp %36 : vector<4x32xf32>
    %cst_25 = arith.constant 1.000000e+00 : f32
    %38 = vector.broadcast %cst_25 : f32 to vector<4x32xf32>
    %39 = arith.addf %38, %37 : vector<4x32xf32>
    %40 = arith.divf %38, %39 : vector<4x32xf32>
    %41 = vector.extract_strided_slice %2 {offsets = [4, 0], sizes = [4, 32], strides = [1, 1]} : vector<8x32xf32> to vector<4x32xf32>
    %cst_26 = arith.constant dense<0.000000e+00> : vector<8x32xf32>
    %42 = tpu.matmul %3, %41, %cst_26 {dimension_numbers = #tpu.dot_dimension_numbers<[1], [0], [0], [1], [0, 0, 1, 1], [], []>} : vector<8x4xf32>, vector<4x32xf32>, vector<8x32xf32> -> vector<8x32xf32>
    %43 = vector.broadcast %4 : vector<8x1xf32> to vector<8x32xf32>
    %44 = arith.mulf %42, %43 : vector<8x32xf32>
    %45 = vector.broadcast %5 : vector<8x1xf32> to vector<8x32xf32>
    %46 = arith.addf %44, %45 : vector<8x32xf32>
    %cst_27 = arith.constant 3.000000e+00 : f32
    %47 = vector.broadcast %cst_27 : f32 to vector<8x32xf32>
    %48 = arith.addf %46, %47 : vector<8x32xf32>
    %cst_28 = arith.constant 0.000000e+00 : f32
    %cst_29 = arith.constant 6.000000e+00 : f32
    %49 = vector.broadcast %cst_28 : f32 to vector<8x32xf32>
    %50 = arith.maximumf %49, %48 : vector<8x32xf32>
    %51 = vector.broadcast %cst_29 : f32 to vector<8x32xf32>
    %52 = arith.minimumf %51, %50 : vector<8x32xf32>
    %cst_30 = arith.constant 0.166666672 : f32
    %53 = vector.broadcast %cst_30 : f32 to vector<8x32xf32>
    %54 = arith.mulf %52, %53 : vector<8x32xf32>
    %55 = arith.mulf %46, %54 : vector<8x32xf32>
    %cst_31 = arith.constant dense<0.000000e+00> : vector<4x32xf32>
    %56 = tpu.matmul %6, %55, %cst_31 {dimension_numbers = #tpu.dot_dimension_numbers<[1], [0], [0], [1], [0, 0, 1, 1], [], []>} : vector<4x8xf32>, vector<8x32xf32>, vector<4x32xf32> -> vector<4x32xf32>
    %57 = vector.broadcast %7 : vector<4x1xf32> to vector<4x32xf32>
    %58 = arith.addf %56, %57 : vector<4x32xf32>
    %59 = arith.negf %58 : vector<4x32xf32>
    %60 = math.exp %59 : vector<4x32xf32>
    %cst_32 = arith.constant 1.000000e+00 : f32
    %61 = vector.broadcast %cst_32 : f32 to vector<4x32xf32>
    %62 = arith.addf %61, %60 : vector<4x32xf32>
    %63 = arith.divf %61, %62 : vector<4x32xf32>
    %cst_33 = arith.constant dense<0.000000e+00> : vector<4x32xf32>
    %64 = tpu.matmul %8, %55, %cst_33 {dimension_numbers = #tpu.dot_dimension_numbers<[1], [0], [0], [1], [0, 0, 1, 1], [], []>} : vector<4x8xf32>, vector<8x32xf32>, vector<4x32xf32> -> vector<4x32xf32>
    %65 = vector.broadcast %9 : vector<4x1xf32> to vector<4x32xf32>
    %66 = arith.addf %64, %65 : vector<4x32xf32>
    %67 = arith.negf %66 : vector<4x32xf32>
    %68 = math.exp %67 : vector<4x32xf32>
    %cst_34 = arith.constant 1.000000e+00 : f32
    %69 = vector.broadcast %cst_34 : f32 to vector<4x32xf32>
    %70 = arith.addf %69, %68 : vector<4x32xf32>
    %71 = arith.divf %69, %70 : vector<4x32xf32>
    %72 = tpu.concatenate %32, %63 in 0 : vector<4x32xf32>, vector<4x32xf32> -> vector<8x32xf32>
    %73 = tpu.concatenate %40, %71 in 0 : vector<4x32xf32>, vector<4x32xf32> -> vector<8x32xf32>
    %c0_35 = arith.constant 0 : index
    %c0_36 = arith.constant 0 : index
    %74 = vector.load %arg3[%c0_35, %c0_36] : memref<32x256xf32, #tpu.memory_space<vmem>>, vector<32x256xf32>
    %cst_37 = arith.constant dense<0.000000e+00> : vector<8x256xf32>
    %75 = tpu.matmul %72, %74, %cst_37 {dimension_numbers = #tpu.dot_dimension_numbers<[1], [0], [0], [1], [0, 0, 1, 1], [], []>} : vector<8x32xf32>, vector<32x256xf32>, vector<8x256xf32> -> vector<8x256xf32>
    %c0_38 = arith.constant 0 : index
    %c0_39 = arith.constant 0 : index
    %76 = vector.load %arg4[%c0_38, %c0_39] : memref<32x256xf32, #tpu.memory_space<vmem>>, vector<32x256xf32>
    %cst_40 = arith.constant dense<0.000000e+00> : vector<8x256xf32>
    %77 = tpu.matmul %73, %76, %cst_40 {dimension_numbers = #tpu.dot_dimension_numbers<[1], [0], [0], [1], [0, 0, 1, 1], [], []>} : vector<8x32xf32>, vector<32x256xf32>, vector<8x256xf32> -> vector<8x256xf32>
    %78 = arith.mulf %75, %77 : vector<8x256xf32>
    %79 = arith.mulf %0, %78 : vector<8x256xf32>
    %c0_41 = arith.constant 0 : index
    %c0_42 = arith.constant 0 : index
    %80 = vector.load %arg12[%c0_41, %c0_42] : memref<8x256xf32, #tpu.memory_space<vmem>>, vector<8x256xf32>
    tpu.vector_store %arg12[%c0_41, %c0_42], %79 {strides = array<i32>} : memref<8x256xf32, #tpu.memory_space<vmem>>, vector<8x256xf32>,
    return
  }
  func.func @transform_0(%arg0: i32) -> (i32, i32) {
    %c0_i32 = arith.constant 0 : i32
    %c0_i32_0 = arith.constant 0 : i32
    return %arg0, %c0_i32 : i32, i32
  }
  func.func @transform_1(%arg0: i32) -> (i32, i32) {
    %c0_i32 = arith.constant 0 : i32
    %c0_i32_0 = arith.constant 0 : i32
    %c0_i32_1 = arith.constant 0 : i32
    return %c0_i32, %c0_i32_0 : i32, i32
  }
  func.func @transform_2(%arg0: i32) -> (i32, i32) {
    %c0_i32 = arith.constant 0 : i32
    %c0_i32_0 = arith.constant 0 : i32
    %c0_i32_1 = arith.constant 0 : i32
    return %c0_i32, %c0_i32_0 : i32, i32
  }
  func.func @transform_3(%arg0: i32) -> (i32, i32) {
    %c0_i32 = arith.constant 0 : i32
    %c0_i32_0 = arith.constant 0 : i32
    %c0_i32_1 = arith.constant 0 : i32
    return %c0_i32, %c0_i32_0 : i32, i32
  }
  func.func @transform_4(%arg0: i32) -> (i32, i32) {
    %c0_i32 = arith.constant 0 : i32
    %c0_i32_0 = arith.constant 0 : i32
    %c0_i32_1 = arith.constant 0 : i32
    return %c0_i32, %c0_i32_0 : i32, i32
  }
  func.func @transform_5(%arg0: i32) -> (i32, i32) {
    %c0_i32 = arith.constant 0 : i32
    %c0_i32_0 = arith.constant 0 : i32
    %c0_i32_1 = arith.constant 0 : i32
    return %c0_i32, %c0_i32_0 : i32, i32
  }
  func.func @transform_6(%arg0: i32) -> (i32, i32) {
    %c0_i32 = arith.constant 0 : i32
    %c0_i32_0 = arith.constant 0 : i32
    %c0_i32_1 = arith.constant 0 : i32
    return %c0_i32, %c0_i32_0 : i32, i32
  }
  func.func @transform_7(%arg0: i32) -> (i32, i32) {
    %c0_i32 = arith.constant 0 : i32
    %c0_i32_0 = arith.constant 0 : i32
    %c0_i32_1 = arith.constant 0 : i32
    return %c0_i32, %c0_i32_0 : i32, i32
  }
  func.func @transform_8(%arg0: i32) -> (i32, i32) {
    %c0_i32 = arith.constant 0 : i32
    %c0_i32_0 = arith.constant 0 : i32
    %c0_i32_1 = arith.constant 0 : i32
    return %c0_i32, %c0_i32_0 : i32, i32
  }
  func.func @transform_9(%arg0: i32) -> (i32, i32) {
    %c0_i32 = arith.constant 0 : i32
    %c0_i32_0 = arith.constant 0 : i32
    %c0_i32_1 = arith.constant 0 : i32
    return %c0_i32, %c0_i32_0 : i32, i32
  }
  func.func @transform_10(%arg0: i32) -> (i32, i32) {
    %c0_i32 = arith.constant 0 : i32
    %c0_i32_0 = arith.constant 0 : i32
    %c0_i32_1 = arith.constant 0 : i32
    return %c0_i32, %c0_i32_0 : i32, i32
  }
  func.func @transform_11(%arg0: i32) -> (i32, i32) {
    %c0_i32 = arith.constant 0 : i32
    %c0_i32_0 = arith.constant 0 : i32
    return %arg0, %c0_i32 : i32, i32
  }
}

</mosaic_0001>

<llo_original>
// kernel: coord_attention.1
$region0: #{coord_attention.1}
  #allocation0 [shape = 'u32[]', space=smem, size = 0x4, offset = 0x4, fixed_abs, tag = 'smem constant byte address 0x4 - core index']
  #allocation1 [shape = 'u32[144,128]{1,0:T(1,128)}', space=vmem, size = 0x12000, scoped, tag = 'internal scratch']
  %s0 = inlined_call_operand.vmem [shape: f32[8,256], index: 0, kind: input, shape index: {}]
  %s1 = inlined_call_operand.vmem [shape: f32[256,32], index: 1, kind: input, shape index: {}]
  %s2 = inlined_call_operand.hbm [shape: f32[32,256], index: 2, kind: input, shape index: {}]
  %s3 = inlined_call_operand.hbm [shape: f32[32,256], index: 3, kind: input, shape index: {}]
  %s4 = inlined_call_operand.vmem [shape: f32[8,4], index: 4, kind: input, shape index: {}]
  %s5 = inlined_call_operand.vmem [shape: f32[8,1], index: 5, kind: input, shape index: {}]
  %s6 = inlined_call_operand.vmem [shape: f32[8,1], index: 6, kind: input, shape index: {}]
  %s7 = inlined_call_operand.hbm [shape: f32[4,8], index: 7, kind: input, shape index: {}]
  %s8 = inlined_call_operand.vmem [shape: f32[4,1], index: 8, kind: input, shape index: {}]
  %s9 = inlined_call_operand.hbm [shape: f32[4,8], index: 9, kind: input, shape index: {}]
  %s10 = inlined_call_operand.vmem [shape: f32[4,1], index: 10, kind: input, shape index: {}]
  %s11 = inlined_call_operand.vmem [shape: f32[8,256], index: 11, kind: output, shape index: {}]
  %s12 = sld [smem:[#allocation0]]
  $region70: #{coord_attention.1} parent=0
    _
  %s14 = ssub.s32 1, %s12
  %s15 = scalar_select 0, %s14, %s12
  $region1: #{coord_attention.1} parent=0
    #allocation2 [shape = 'u8[32768]{0}', space=vmem, size = 0x8000, scoped, tag = 'input window, operand 2, single buffered']
    #allocation3 [shape = 's32[1]{0}', space=sflag, size = 0x4, scoped, tag = 'scoped memory for coord_attention.1']
    #allocation4 [shape = 'u8[32768]{0}', space=vmem, size = 0x8000, scoped, tag = 'input window, operand 3, single buffered']
    #allocation5 [shape = 's32[1]{0}', space=sflag, size = 0x4, scoped, tag = 'scoped memory for coord_attention.1']
    #allocation6 [shape = 'u8[2048]{0}', space=vmem, size = 0x800, scoped, tag = 'input window, operand 7, single buffered']
    #allocation7 [shape = 'u8[2048]{0}', space=vmem, size = 0x800, scoped, tag = 'input window, operand 9, single buffered']
    #allocation8 [shape = 's32[1]{0}', space=sflag, size = 0x4, scoped, tag = 'scoped memory for coord_attention.1']
    %16 = vsyncpa [#allocation3], 0
    %17 = vsyncpa [#allocation5], 0
    %18 = vsyncpa [#allocation8], 0
    // Predicated region
    $region2: #{coord_attention.1} parent=1 // pred_check
      _
    $region3: #{coord_attention.1} parent=1 // pred_check_branch
      %20 = sbr.rel (0) target = $region5
    $region4: #{coord_attention.1} parent=1 // pred_region
      _
    $region5: #{coord_attention.1} parent=1 // pred_fallthru
      _
    // Predicated region
    $region6: #{coord_attention.1} parent=1 // pred_check
      _
    $region7: #{coord_attention.1} parent=1 // pred_check_branch
      %22 = sbr.rel (0) target = $region9
    $region8: #{coord_attention.1} parent=1 // pred_region
      _
    $region9: #{coord_attention.1} parent=1 // pred_fallthru
      _
    // Predicated region
    $region10: #{coord_attention.1} parent=1 // pred_check
      _
    $region11: #{coord_attention.1} parent=1 // pred_check_branch
      %24 = sbr.rel (0) target = $region13
    $region12: #{coord_attention.1} parent=1 // pred_region
      %s26 = ssub.s32 1024, 1024
      %27 = vsyncadd [#allocation3], %s26
      %s28 = sshll.u32 [#allocation2], 4
      %s29 = int_to_ptr.vmem [resolvable:$true] %s28
      %34 = dma.hbm_to_vmem [thread:$0]  %s2, 1024, %s29, [#allocation3], 256, 256, 16
    $region13: #{coord_attention.1} parent=1 // pred_fallthru
      _
    // Predicated region
    $region14: #{coord_attention.1} parent=1 // pred_check
      _
    $region15: #{coord_attention.1} parent=1 // pred_check_branch
      %36 = sbr.rel (0) target = $region17
    $region16: #{coord_attention.1} parent=1 // pred_region
      %s38 = ssub.s32 1024, 1024
      %39 = vsyncadd [#allocation5], %s38
      %s40 = sshll.u32 [#allocation4], 4
      %s41 = int_to_ptr.vmem [resolvable:$true] %s40
      %46 = dma.hbm_to_vmem [thread:$0]  %s3, 1024, %s41, [#allocation5], 256, 256, 16
    $region17: #{coord_attention.1} parent=1 // pred_fallthru
      _
    // Predicated region
    $region18: #{coord_attention.1} parent=1 // pred_check
      _
    $region19: #{coord_attention.1} parent=1 // pred_check_branch
      %48 = sbr.rel (0) target = $region21
    $region20: #{coord_attention.1} parent=1 // pred_region
      _
    $region21: #{coord_attention.1} parent=1 // pred_fallthru
      _
    // Predicated region
    $region22: #{coord_attention.1} parent=1 // pred_check
      _
    $region23: #{coord_attention.1} parent=1 // pred_check_branch
      %50 = sbr.rel (0) target = $region25
    $region24: #{coord_attention.1} parent=1 // pred_region
      _
    $region25: #{coord_attention.1} parent=1 // pred_fallthru
      _
    // Predicated region
    $region26: #{coord_attention.1} parent=1 // pred_check
      _
    $region27: #{coord_attention.1} parent=1 // pred_check_branch
      %52 = sbr.rel (0) target = $region29
    $region28: #{coord_attention.1} parent=1 // pred_region
      _
    $region29: #{coord_attention.1} parent=1 // pred_fallthru
      _
    // Predicated region
    $region30: #{coord_attention.1} parent=1 // pred_check
      _
    $region31: #{coord_attention.1} parent=1 // pred_check_branch
      %54 = sbr.rel (0) target = $region33
    $region32: #{coord_attention.1} parent=1 // pred_region
      %s56 = ssub.s32 64, 64
      %57 = vsyncadd [#allocation5], %s56
      %s59 = sshll.u32 [#allocation6], 4
      %s60 = int_to_ptr.vmem [resolvable:$true] %s59
      %62 = dma.hbm_to_vmem [thread:$0]  %s7, 64, %s60, [#allocation5]
    $region33: #{coord_attention.1} parent=1 // pred_fallthru
      _
    // Predicated region
    $region34: #{coord_attention.1} parent=1 // pred_check
      _
    $region35: #{coord_attention.1} parent=1 // pred_check_branch
      %64 = sbr.rel (0) target = $region37
    $region36: #{coord_attention.1} parent=1 // pred_region
      _
    $region37: #{coord_attention.1} parent=1 // pred_fallthru
      _
    // Predicated region
    $region38: #{coord_attention.1} parent=1 // pred_check
      _
    $region39: #{coord_attention.1} parent=1 // pred_check_branch
      %66 = sbr.rel (0) target = $region41
    $region40: #{coord_attention.1} parent=1 // pred_region
      %s68 = ssub.s32 64, 64
      %69 = vsyncadd [#allocation8], %s68
      %s71 = sshll.u32 [#allocation7], 4
      %s72 = int_to_ptr.vmem [resolvable:$true] %s71
      %74 = dma.hbm_to_vmem [thread:$0]  %s9, 64, %s72, [#allocation8]
    $region41: #{coord_attention.1} parent=1 // pred_fallthru
      _
    // Predicated region
    $region42: #{coord_attention.1} parent=1 // pred_check
      _
    $region43: #{coord_attention.1} parent=1 // pred_check_branch
      %76 = sbr.rel (0) target = $region45
    $region44: #{coord_attention.1} parent=1 // pred_region
      _
    $region45: #{coord_attention.1} parent=1 // pred_fallthru
      _
    // Predicated region
    $region46: #{coord_attention.1} parent=1 // pred_check
      _
    $region47: #{coord_attention.1} parent=1 // pred_check_branch
      %78 = sbr.rel (0) target = $region49
    $region48: #{coord_attention.1} parent=1 // pred_region
      %79 = dma.done [#allocation3], 1024
    $region49: #{coord_attention.1} parent=1 // pred_fallthru
      _
    // Predicated region
    $region50: #{coord_attention.1} parent=1 // pred_check
      _
    $region51: #{coord_attention.1} parent=1 // pred_check_branch
      %81 = sbr.rel (0) target = $region53
    $region52: #{coord_attention.1} parent=1 // pred_region
      %82 = dma.done [#allocation5], 1024
    $region53: #{coord_attention.1} parent=1 // pred_fallthru
      _
    // Predicated region
    $region54: #{coord_attention.1} parent=1 // pred_check
      _
    $region55: #{coord_attention.1} parent=1 // pred_check_branch
      %84 = sbr.rel (0) target = $region57
    $region56: #{coord_attention.1} parent=1 // pred_region
      %85 = dma.done [#allocation5], 64
    $region57: #{coord_attention.1} parent=1 // pred_fallthru
      _
    // Predicated region
    $region58: #{coord_attention.1} parent=1 // pred_check
      _
    $region59: #{coord_attention.1} parent=1 // pred_check_branch
      %87 = sbr.rel (0) target = $region61
    $region60: #{coord_attention.1} parent=1 // pred_region
      %88 = dma.done [#allocation8], 64
    $region61: #{coord_attention.1} parent=1 // pred_fallthru
      _
    %v89 = vld [vmem:[%s0] sm:$0xff]
    %v90 = vld [vmem:[%s0 + $0x8] sm:$0xff]
    %v91 = vld [vmem:[%s1] sm:$0xff]
    %v92 = vld [vmem:[%s1 + $0x8] sm:$0xff]
    %v93 = vld [vmem:[%s1 + $0x10] sm:$0xff]
    %v94 = vld [vmem:[%s1 + $0x18] sm:$0xff]
    %v95 = vld [vmem:[%s1 + $0x20] sm:$0xff]
    %v96 = vld [vmem:[%s1 + $0x28] sm:$0xff]
    %v97 = vld [vmem:[%s1 + $0x30] sm:$0xff]
    %v98 = vld [vmem:[%s1 + $0x38] sm:$0xff]
    %v99 = vld [vmem:[%s1 + $0x40] sm:$0xff]
    %v100 = vld [vmem:[%s1 + $0x48] sm:$0xff]
    %v101 = vld [vmem:[%s1 + $0x50] sm:$0xff]
    %v102 = vld [vmem:[%s1 + $0x58] sm:$0xff]
    %v103 = vld [vmem:[%s1 + $0x60] sm:$0xff]
    %v104 = vld [vmem:[%s1 + $0x68] sm:$0xff]
    %v105 = vld [vmem:[%s1 + $0x70] sm:$0xff]
    %v106 = vld [vmem:[%s1 + $0x78] sm:$0xff]
    %v107 = vld [vmem:[%s1 + $0x80] sm:$0xff]
    %v108 = vld [vmem:[%s1 + $0x88] sm:$0xff]
    %v109 = vld [vmem:[%s1 + $0x90] sm:$0xff]
    %v110 = vld [vmem:[%s1 + $0x98] sm:$0xff]
    %v111 = vld [vmem:[%s1 + $0xa0] sm:$0xff]
    %v112 = vld [vmem:[%s1 + $0xa8] sm:$0xff]
    %v113 = vld [vmem:[%s1 + $0xb0] sm:$0xff]
    %v114 = vld [vmem:[%s1 + $0xb8] sm:$0xff]
    %v115 = vld [vmem:[%s1 + $0xc0] sm:$0xff]
    %v116 = vld [vmem:[%s1 + $0xc8] sm:$0xff]
    %v117 = vld [vmem:[%s1 + $0xd0] sm:$0xff]
    %v118 = vld [vmem:[%s1 + $0xd8] sm:$0xff]
    %v119 = vld [vmem:[%s1 + $0xe0] sm:$0xff]
    %v120 = vld [vmem:[%s1 + $0xe8] sm:$0xff]
    %v121 = vld [vmem:[%s1 + $0xf0] sm:$0xff]
    %v122 = vld [vmem:[%s1 + $0xf8] sm:$0xff]
    %123 = vmatprep.subr.mxu0 0.0
    %124 = vmatpush1.msra.mxu0 %v91
    %125 = vmatprep.subr.mxu0 0.0
    %126 = vmatpush1.msra.mxu0 %v92
    %127 = vmatprep.subr.mxu0 0.0
    %128 = vmatpush1.msra.mxu0 %v93
    %129 = vmatprep.subr.mxu0 0.0
    %130 = vmatpush1.msra.mxu0 %v94
    %131 = vmatprep.subr.mxu0 0.0
    %132 = vmatpush1.msra.mxu0 %v95
    %133 = vmatprep.subr.mxu0 0.0
    %134 = vmatpush1.msra.mxu0 %v96
    %135 = vmatprep.subr.mxu0 0.0
    %136 = vmatpush1.msra.mxu0 %v97
    %137 = vmatprep.subr.mxu0 0.0
    %138 = vmatpush1.msra.mxu0 %v98
    %139 = vmatprep.subr.mxu0 0.0
    %140 = vmatpush1.msra.mxu0 %v99
    %141 = vmatprep.subr.mxu0 0.0
    %142 = vmatpush1.msra.mxu0 %v100
    %143 = vmatprep.subr.mxu0 0.0
    %144 = vmatpush1.msra.mxu0 %v101
    %145 = vmatprep.subr.mxu0 0.0
    %146 = vmatpush1.msra.mxu0 %v102
    %147 = vmatprep.subr.mxu0 0.0
    %148 = vmatpush1.msra.mxu0 %v103
    %149 = vmatprep.subr.mxu0 0.0
    %150 = vmatpush1.msra.mxu0 %v104
    %151 = vmatprep.subr.mxu0 0.0
    %152 = vmatpush1.msra.mxu0 %v105
    %153 = vmatprep.subr.mxu0 0.0
    %154 = vmatpush1.msra.mxu0 %v106
    %155 = vmatprep.subr.mxu0 0.0
    %156 = vmatpush1.msra.mxu0 %v107
    %157 = vmatprep.subr.mxu0 0.0
    %158 = vmatpush1.msra.mxu0 %v108
    %159 = vmatprep.subr.mxu0 0.0
    %160 = vmatpush1.msra.mxu0 %v109
    %161 = vmatprep.subr.mxu0 0.0
    %162 = vmatpush1.msra.mxu0 %v110
    %163 = vmatprep.subr.mxu0 0.0
    %164 = vmatpush1.msra.mxu0 %v111
    %165 = vmatprep.subr.mxu0 0.0
    %166 = vmatpush1.msra.mxu0 %v112
    %167 = vmatprep.subr.mxu0 0.0
    %168 = vmatpush1.msra.mxu0 %v113
    %169 = vmatprep.subr.mxu0 0.0
    %170 = vmatpush1.msra.mxu0 %v114
    %171 = vmatprep.subr.mxu0 0.0
    %172 = vmatpush1.msra.mxu0 %v115
    %173 = vmatprep.subr.mxu0 0.0
    %174 = vmatpush1.msra.mxu0 %v116
    %175 = vmatprep.subr.mxu0 0.0
    %176 = vmatpush1.msra.mxu0 %v117
    %177 = vmatprep.subr.mxu0 0.0
    %178 = vmatpush1.msra.mxu0 %v118
    %179 = vmatprep.subr.mxu0 0.0
    %180 = vmatpush1.msra.mxu0 %v119
    %181 = vmatprep.subr.mxu0 0.0
    %182 = vmatpush1.msra.mxu0 %v120
    %183 = vmatprep.subr.mxu0 0.0
    %184 = vmatpush1.msra.mxu0 %v121
    %185 = vmatprep.subr.mxu0 0.0
    %186 = vmatpush1.msra.mxu0 %v122
    %187 = vmatprep.mubr.f32.mxu0 %v90
    %188 = vmatmul.mubr.f32.gmra.mrb[0].mxu0 %v89
    %v189 = vpop.f32.mrb[0].mxu0
    %v190 = vadd.f32 0.0, %v189
    %v191 = vpop.f32.mrb[0].mxu0
    %192 = vdwg.mxu0
    %v193 = vld [vmem:[%s4] sm:$0xff]
    %v194 = vld [vmem:[%s5] sm:$0xff]
    %v195 = vld [vmem:[%s6] sm:$0xff]
    %v196 = vld [vmem:[#allocation6] sm:$0xf]
    %v197 = vld [vmem:[%s8] sm:$0xf]
    %v198 = vld [vmem:[#allocation7] sm:$0xf]
    %v199 = vld [vmem:[%s10] sm:$0xf]
    %vm200 = vcmask 31744
    %v202 = vsel %vm200, %v193, 0
    %vm204 = vcmask 1043456
    %v206 = vsel %vm204, %v190, 0
    %208 = vmatprep.subr.mxu0 0.0
    %209 = vmatpush1.msra.mxu0 %v206
    %210 = vmatprep.subr.mxu0 0.0
    %211 = vmatpush1.msra.mxu0 0.0
    %212 = vmatprep.subr.mxu0 0.0
    %213 = vmatpush1.msra.mxu0 0.0
    %214 = vmatprep.subr.mxu0 0.0
    %215 = vmatpush1.msra.mxu0 0.0
    %216 = vmatprep.subr.mxu0 0.0
    %217 = vmatpush1.msra.mxu0 0.0
    %218 = vmatprep.subr.mxu0 0.0
    %219 = vmatpush1.msra.mxu0 0.0
    %220 = vmatprep.subr.mxu0 0.0
    %221 = vmatpush1.msra.mxu0 0.0
    %222 = vmatprep.subr.mxu0 0.0
    %223 = vmatpush1.msra.mxu0 0.0
    %224 = vmatprep.subr.mxu0 0.0
    %225 = vmatpush1.msra.mxu0 0.0
    %226 = vmatprep.subr.mxu0 0.0
    %227 = vmatpush1.msra.mxu0 0.0
    %228 = vmatprep.subr.mxu0 0.0
    %229 = vmatpush1.msra.mxu0 0.0
    %230 = vmatprep.subr.mxu0 0.0
    %231 = vmatpush1.msra.mxu0 0.0
    %232 = vmatprep.subr.mxu0 0.0
    %233 = vmatpush1.msra.mxu0 0.0
    %234 = vmatprep.subr.mxu0 0.0
    %235 = vmatpush1.msra.mxu0 0.0
    %236 = vmatprep.subr.mxu0 0.0
    %237 = vmatpush1.msra.mxu0 0.0
    %238 = vmatprep.subr.mxu0 0.0
    %239 = vmatpush1.msra.mxu0 0.0
    %240 = vmatprep.subr.mxu0 0.0
    %241 = vmatpush1.msra.mxu0 0.0
    %242 = vmatprep.subr.mxu0 0.0
    %243 = vmatpush1.msra.mxu0 0.0
    %244 = vmatprep.subr.mxu0 0.0
    %245 = vmatpush1.msra.mxu0 0.0
    %246 = vmatprep.subr.mxu0 0.0
    %247 = vmatpush1.msra.mxu0 0.0
    %248 = vmatprep.subr.mxu0 0.0
    %249 = vmatpush1.msra.mxu0 0.0
    %250 = vmatprep.subr.mxu0 0.0
    %251 = vmatpush1.msra.mxu0 0.0
    %252 = vmatprep.subr.mxu0 0.0
    %253 = vmatpush1.msra.mxu0 0.0
    %254 = vmatprep.subr.mxu0 0.0
    %255 = vmatpush1.msra.mxu0 0.0
    %256 = vmatprep.subr.mxu0 0.0
    %257 = vmatpush1.msra.mxu0 0.0
    %258 = vmatprep.subr.mxu0 0.0
    %259 = vmatpush1.msra.mxu0 0.0
    %260 = vmatprep.subr.mxu0 0.0
    %261 = vmatpush1.msra.mxu0 0.0
    %262 = vmatprep.subr.mxu0 0.0
    %263 = vmatpush1.msra.mxu0 0.0
    %264 = vmatprep.subr.mxu0 0.0
    %265 = vmatpush1.msra.mxu0 0.0
    %266 = vmatprep.subr.mxu0 0.0
    %267 = vmatpush1.msra.mxu0 0.0
    %268 = vmatprep.subr.mxu0 0.0
    %269 = vmatpush1.msra.mxu0 0.0
    %270 = vmatprep.subr.mxu0 0.0
    %271 = vmatpush1.msra.mxu0 0.0
    %272 = vmatprep.mubr.f32.mxu0 0.0
    %273 = vmatmul.mubr.f32.gmra.mrb[0].mxu0 %v202
    %v274 = vpop.f32.mrb[0].mxu0
    %v275 = vadd.f32 0.0, %v274
    %v276 = vpop.f32.mrb[0].mxu0
    %277 = vdwg.mxu0
    %279 = vset.pattern.permute.xlu0 0
    %280 = vperm.xlu0 %279, %v194
    %v281 = vpop.permute.xlu0 %280
    %v283 = vmul.f32 %v275, %v281
    %285 = vset.pattern.permute.xlu0 0
    %286 = vperm.xlu0 %285, %v195
    %v287 = vpop.permute.xlu0 %286
    %v289 = vadd.f32 %v283, %v287
    %v290 = vadd.f32 %v289, 3.0
    %v291 = vmax.f32 %v290, 0.0
    %v292 = vmin.f32 %v291, 6.0
    %v293 = vmul.f32 %v292, 0.16666667
    %v294 = vmul.f32 %v289, %v293
    %296 = vset.pattern.permute.xlu0 0
    %297 = vperm.xlu0 %296, %v197
    %v298 = vpop.permute.xlu0 %297
    %vm300 = vcmask 64512
    %v302 = vsel %vm300, %v196, 0
    %304 = vmatprep.subr.mxu0 0.0
    %305 = vmatpush1.msra.mxu0 %v294
    %306 = vmatprep.subr.mxu0 0.0
    %307 = vmatpush1.msra.mxu0 0.0
    %308 = vmatprep.subr.mxu0 0.0
    %309 = vmatpush1.msra.mxu0 0.0
    %310 = vmatprep.subr.mxu0 0.0
    %311 = vmatpush1.msra.mxu0 0.0
    %312 = vmatprep.subr.mxu0 0.0
    %313 = vmatpush1.msra.mxu0 0.0
    %314 = vmatprep.subr.mxu0 0.0
    %315 = vmatpush1.msra.mxu0 0.0
    %316 = vmatprep.subr.mxu0 0.0
    %317 = vmatpush1.msra.mxu0 0.0
    %318 = vmatprep.subr.mxu0 0.0
    %319 = vmatpush1.msra.mxu0 0.0
    %320 = vmatprep.subr.mxu0 0.0
    %321 = vmatpush1.msra.mxu0 0.0
    %322 = vmatprep.subr.mxu0 0.0
    %323 = vmatpush1.msra.mxu0 0.0
    %324 = vmatprep.subr.mxu0 0.0
    %325 = vmatpush1.msra.mxu0 0.0
    %326 = vmatprep.subr.mxu0 0.0
    %327 = vmatpush1.msra.mxu0 0.0
    %328 = vmatprep.subr.mxu0 0.0
    %329 = vmatpush1.msra.mxu0 0.0
    %330 = vmatprep.subr.mxu0 0.0
    %331 = vmatpush1.msra.mxu0 0.0
    %332 = vmatprep.subr.mxu0 0.0
    %333 = vmatpush1.msra.mxu0 0.0
    %334 = vmatprep.subr.mxu0 0.0
    %335 = vmatpush1.msra.mxu0 0.0
    %336 = vmatprep.subr.mxu0 0.0
    %337 = vmatpush1.msra.mxu0 0.0
    %338 = vmatprep.subr.mxu0 0.0
    %339 = vmatpush1.msra.mxu0 0.0
    %340 = vmatprep.subr.mxu0 0.0
    %341 = vmatpush1.msra.mxu0 0.0
    %342 = vmatprep.subr.mxu0 0.0
    %343 = vmatpush1.msra.mxu0 0.0
    %344 = vmatprep.subr.mxu0 0.0
    %345 = vmatpush1.msra.mxu0 0.0
    %346 = vmatprep.subr.mxu0 0.0
    %347 = vmatpush1.msra.mxu0 0.0
    %348 = vmatprep.subr.mxu0 0.0
    %349 = vmatpush1.msra.mxu0 0.0
    %350 = vmatprep.subr.mxu0 0.0
    %351 = vmatpush1.msra.mxu0 0.0
    %352 = vmatprep.subr.mxu0 0.0
    %353 = vmatpush1.msra.mxu0 0.0
    %354 = vmatprep.subr.mxu0 0.0
    %355 = vmatpush1.msra.mxu0 0.0
    %356 = vmatprep.subr.mxu0 0.0
    %357 = vmatpush1.msra.mxu0 0.0
    %358 = vmatprep.subr.mxu0 0.0
    %359 = vmatpush1.msra.mxu0 0.0
    %360 = vmatprep.subr.mxu0 0.0
    %361 = vmatpush1.msra.mxu0 0.0
    %362 = vmatprep.subr.mxu0 0.0
    %363 = vmatpush1.msra.mxu0 0.0
    %364 = vmatprep.subr.mxu0 0.0
    %365 = vmatpush1.msra.mxu0 0.0
    %366 = vmatprep.subr.mxu0 0.0
    %367 = vmatpush1.msra.mxu0 0.0
    %368 = vmatprep.mubr.f32.mxu0 0.0
    %369 = vmatmul.mubr.f32.gmra.mrb[0].mxu0 %v302
    %v370 = vpop.f32.mrb[0].mxu0
    %v371 = vadd.f32 %v298, %v370
    %v372 = vpop.f32.mrb[0].mxu0
    %373 = vdwg.mxu0
    %v374 = vxor.u32 %v371, 2147483648
    %v375 = vmul.f32 %v374, 1.442695
    %v376 = vpow.pop %v375
    %v377 = vadd.f32 %v376, 1.0
    %v378 = vrcp.pop %v377
    %v379 = vmul.f32 1.0, %v378
    %381 = vset.pattern.permute.xlu0 0
    %382 = vperm.xlu0 %381, %v199
    %v383 = vpop.permute.xlu0 %382
    %v386 = vsel %vm300, %v198, 0
    %388 = vmatprep.subr.mxu0 0.0
    %389 = vmatpush1.msra.mxu0 %v294
    %390 = vmatprep.subr.mxu0 0.0
    %391 = vmatpush1.msra.mxu0 0.0
    %392 = vmatprep.subr.mxu0 0.0
    %393 = vmatpush1.msra.mxu0 0.0
    %394 = vmatprep.subr.mxu0 0.0
    %395 = vmatpush1.msra.mxu0 0.0
    %396 = vmatprep.subr.mxu0 0.0
    %397 = vmatpush1.msra.mxu0 0.0
    %398 = vmatprep.subr.mxu0 0.0
    %399 = vmatpush1.msra.mxu0 0.0
    %400 = vmatprep.subr.mxu0 0.0
    %401 = vmatpush1.msra.mxu0 0.0
    %402 = vmatprep.subr.mxu0 0.0
    %403 = vmatpush1.msra.mxu0 0.0
    %404 = vmatprep.subr.mxu0 0.0
    %405 = vmatpush1.msra.mxu0 0.0
    %406 = vmatprep.subr.mxu0 0.0
    %407 = vmatpush1.msra.mxu0 0.0
    %408 = vmatprep.subr.mxu0 0.0
    %409 = vmatpush1.msra.mxu0 0.0
    %410 = vmatprep.subr.mxu0 0.0
    %411 = vmatpush1.msra.mxu0 0.0
    %412 = vmatprep.subr.mxu0 0.0
    %413 = vmatpush1.msra.mxu0 0.0
    %414 = vmatprep.subr.mxu0 0.0
    %415 = vmatpush1.msra.mxu0 0.0
    %416 = vmatprep.subr.mxu0 0.0
    %417 = vmatpush1.msra.mxu0 0.0
    %418 = vmatprep.subr.mxu0 0.0
    %419 = vmatpush1.msra.mxu0 0.0
    %420 = vmatprep.subr.mxu0 0.0
    %421 = vmatpush1.msra.mxu0 0.0
    %422 = vmatprep.subr.mxu0 0.0
    %423 = vmatpush1.msra.mxu0 0.0
    %424 = vmatprep.subr.mxu0 0.0
    %425 = vmatpush1.msra.mxu0 0.0
    %426 = vmatprep.subr.mxu0 0.0
    %427 = vmatpush1.msra.mxu0 0.0
    %428 = vmatprep.subr.mxu0 0.0
    %429 = vmatpush1.msra.mxu0 0.0
    %430 = vmatprep.subr.mxu0 0.0
    %431 = vmatpush1.msra.mxu0 0.0
    %432 = vmatprep.subr.mxu0 0.0
    %433 = vmatpush1.msra.mxu0 0.0
    %434 = vmatprep.subr.mxu0 0.0
    %435 = vmatpush1.msra.mxu0 0.0
    %436 = vmatprep.subr.mxu0 0.0
    %437 = vmatpush1.msra.mxu0 0.0
    %438 = vmatprep.subr.mxu0 0.0
    %439 = vmatpush1.msra.mxu0 0.0
    %440 = vmatprep.subr.mxu0 0.0
    %441 = vmatpush1.msra.mxu0 0.0
    %442 = vmatprep.subr.mxu0 0.0
    %443 = vmatpush1.msra.mxu0 0.0
    %444 = vmatprep.subr.mxu0 0.0
    %445 = vmatpush1.msra.mxu0 0.0
    %446 = vmatprep.subr.mxu0 0.0
    %447 = vmatpush1.msra.mxu0 0.0
    %448 = vmatprep.subr.mxu0 0.0
    %449 = vmatpush1.msra.mxu0 0.0
    %450 = vmatprep.subr.mxu0 0.0
    %451 = vmatpush1.msra.mxu0 0.0
    %452 = vmatprep.mubr.f32.mxu0 0.0
    %453 = vmatmul.mubr.f32.gmra.mrb[0].mxu0 %v386
    %v454 = vpop.f32.mrb[0].mxu0
    %v455 = vadd.f32 %v383, %v454
    %v456 = vpop.f32.mrb[0].mxu0
    %457 = vdwg.mxu0
    %v458 = vxor.u32 %v455, 2147483648
    %v459 = vmul.f32 %v458, 1.442695
    %v460 = vpow.pop %v459
    %v461 = vadd.f32 %v460, 1.0
    %v462 = vrcp.pop %v461
    %v463 = vmul.f32 1.0, %v462
    %v464 = vrot.slane %v190, 4
    %v465 = vsel %vm204, %v464, 0
    %467 = vmatprep.subr.mxu0 0.0
    %468 = vmatpush1.msra.mxu0 %v465
    %469 = vmatprep.subr.mxu0 0.0
    %470 = vmatpush1.msra.mxu0 0.0
    %471 = vmatprep.subr.mxu0 0.0
    %472 = vmatpush1.msra.mxu0 0.0
    %473 = vmatprep.subr.mxu0 0.0
    %474 = vmatpush1.msra.mxu0 0.0
    %475 = vmatprep.subr.mxu0 0.0
    %476 = vmatpush1.msra.mxu0 0.0
    %477 = vmatprep.subr.mxu0 0.0
    %478 = vmatpush1.msra.mxu0 0.0
    %479 = vmatprep.subr.mxu0 0.0
    %480 = vmatpush1.msra.mxu0 0.0
    %481 = vmatprep.subr.mxu0 0.0
    %482 = vmatpush1.msra.mxu0 0.0
    %483 = vmatprep.subr.mxu0 0.0
    %484 = vmatpush1.msra.mxu0 0.0
    %485 = vmatprep.subr.mxu0 0.0
    %486 = vmatpush1.msra.mxu0 0.0
    %487 = vmatprep.subr.mxu0 0.0
    %488 = vmatpush1.msra.mxu0 0.0
    %489 = vmatprep.subr.mxu0 0.0
    %490 = vmatpush1.msra.mxu0 0.0
    %491 = vmatprep.subr.mxu0 0.0
    %492 = vmatpush1.msra.mxu0 0.0
    %493 = vmatprep.subr.mxu0 0.0
    %494 = vmatpush1.msra.mxu0 0.0
    %495 = vmatprep.subr.mxu0 0.0
    %496 = vmatpush1.msra.mxu0 0.0
    %497 = vmatprep.subr.mxu0 0.0
    %498 = vmatpush1.msra.mxu0 0.0
    %499 = vmatprep.subr.mxu0 0.0
    %500 = vmatpush1.msra.mxu0 0.0
    %501 = vmatprep.subr.mxu0 0.0
    %502 = vmatpush1.msra.mxu0 0.0
    %503 = vmatprep.subr.mxu0 0.0
    %504 = vmatpush1.msra.mxu0 0.0
    %505 = vmatprep.subr.mxu0 0.0
    %506 = vmatpush1.msra.mxu0 0.0
    %507 = vmatprep.subr.mxu0 0.0
    %508 = vmatpush1.msra.mxu0 0.0
    %509 = vmatprep.subr.mxu0 0.0
    %510 = vmatpush1.msra.mxu0 0.0
    %511 = vmatprep.subr.mxu0 0.0
    %512 = vmatpush1.msra.mxu0 0.0
    %513 = vmatprep.subr.mxu0 0.0
    %514 = vmatpush1.msra.mxu0 0.0
    %515 = vmatprep.subr.mxu0 0.0
    %516 = vmatpush1.msra.mxu0 0.0
    %517 = vmatprep.subr.mxu0 0.0
    %518 = vmatpush1.msra.mxu0 0.0
    %519 = vmatprep.subr.mxu0 0.0
    %520 = vmatpush1.msra.mxu0 0.0
    %521 = vmatprep.subr.mxu0 0.0
    %522 = vmatpush1.msra.mxu0 0.0
    %523 = vmatprep.subr.mxu0 0.0
    %524 = vmatpush1.msra.mxu0 0.0
    %525 = vmatprep.subr.mxu0 0.0
    %526 = vmatpush1.msra.mxu0 0.0
    %527 = vmatprep.subr.mxu0 0.0
    %528 = vmatpush1.msra.mxu0 0.0
    %529 = vmatprep.subr.mxu0 0.0
    %530 = vmatpush1.msra.mxu0 0.0
    %531 = vmatprep.mubr.f32.mxu0 0.0
    %532 = vmatmul.mubr.f32.gmra.mrb[0].mxu0 %v202
    %v533 = vpop.f32.mrb[0].mxu0
    %v534 = vadd.f32 0.0, %v533
    %v535 = vpop.f32.mrb[0].mxu0
    %536 = vdwg.mxu0
    %v537 = vmul.f32 %v534, %v281
    %v538 = vadd.f32 %v537, %v287
    %v539 = vadd.f32 %v538, 3.0
    %v540 = vmax.f32 %v539, 0.0
    %v541 = vmin.f32 %v540, 6.0
    %v542 = vmul.f32 %v541, 0.16666667
    %v543 = vmul.f32 %v538, %v542
    %544 = vmatprep.subr.mxu0 0.0
    %545 = vmatpush1.msra.mxu0 %v543
    %546 = vmatprep.subr.mxu0 0.0
    %547 = vmatpush1.msra.mxu0 0.0
    %548 = vmatprep.subr.mxu0 0.0
    %549 = vmatpush1.msra.mxu0 0.0
    %550 = vmatprep.subr.mxu0 0.0
    %551 = vmatpush1.msra.mxu0 0.0
    %552 = vmatprep.subr.mxu0 0.0
    %553 = vmatpush1.msra.mxu0 0.0
    %554 = vmatprep.subr.mxu0 0.0
    %555 = vmatpush1.msra.mxu0 0.0
    %556 = vmatprep.subr.mxu0 0.0
    %557 = vmatpush1.msra.mxu0 0.0
    %558 = vmatprep.subr.mxu0 0.0
    %559 = vmatpush1.msra.mxu0 0.0
    %560 = vmatprep.subr.mxu0 0.0
    %561 = vmatpush1.msra.mxu0 0.0
    %562 = vmatprep.subr.mxu0 0.0
    %563 = vmatpush1.msra.mxu0 0.0
    %564 = vmatprep.subr.mxu0 0.0
    %565 = vmatpush1.msra.mxu0 0.0
    %566 = vmatprep.subr.mxu0 0.0
    %567 = vmatpush1.msra.mxu0 0.0
    %568 = vmatprep.subr.mxu0 0.0
    %569 = vmatpush1.msra.mxu0 0.0
    %570 = vmatprep.subr.mxu0 0.0
    %571 = vmatpush1.msra.mxu0 0.0
    %572 = vmatprep.subr.mxu0 0.0
    %573 = vmatpush1.msra.mxu0 0.0
    %574 = vmatprep.subr.mxu0 0.0
    %575 = vmatpush1.msra.mxu0 0.0
    %576 = vmatprep.subr.mxu0 0.0
    %577 = vmatpush1.msra.mxu0 0.0
    %578 = vmatprep.subr.mxu0 0.0
    %579 = vmatpush1.msra.mxu0 0.0
    %580 = vmatprep.subr.mxu0 0.0
    %581 = vmatpush1.msra.mxu0 0.0
    %582 = vmatprep.subr.mxu0 0.0
    %583 = vmatpush1.msra.mxu0 0.0
    %584 = vmatprep.subr.mxu0 0.0
    %585 = vmatpush1.msra.mxu0 0.0
    %586 = vmatprep.subr.mxu0 0.0
    %587 = vmatpush1.msra.mxu0 0.0
    %588 = vmatprep.subr.mxu0 0.0
    %589 = vmatpush1.msra.mxu0 0.0
    %590 = vmatprep.subr.mxu0 0.0
    %591 = vmatpush1.msra.mxu0 0.0
    %592 = vmatprep.subr.mxu0 0.0
    %593 = vmatpush1.msra.mxu0 0.0
    %594 = vmatprep.subr.mxu0 0.0
    %595 = vmatpush1.msra.mxu0 0.0
    %596 = vmatprep.subr.mxu0 0.0
    %597 = vmatpush1.msra.mxu0 0.0
    %598 = vmatprep.subr.mxu0 0.0
    %599 = vmatpush1.msra.mxu0 0.0
    %600 = vmatprep.subr.mxu0 0.0
    %601 = vmatpush1.msra.mxu0 0.0
    %602 = vmatprep.subr.mxu0 0.0
    %603 = vmatpush1.msra.mxu0 0.0
    %604 = vmatprep.subr.mxu0 0.0
    %605 = vmatpush1.msra.mxu0 0.0
    %606 = vmatprep.subr.mxu0 0.0
    %607 = vmatpush1.msra.mxu0 0.0
    %608 = vmatprep.mubr.f32.mxu0 0.0
    %609 = vmatmul.mubr.f32.gmra.mrb[0].mxu0 %v302
    %v610 = vpop.f32.mrb[0].mxu0
    %v611 = vadd.f32 %v298, %v610
    %v612 = vpop.f32.mrb[0].mxu0
    %613 = vdwg.mxu0
    %v614 = vxor.u32 %v611, 2147483648
    %v615 = vmul.f32 %v614, 1.442695
    %v616 = vpow.pop %v615
    %v617 = vadd.f32 %v616, 1.0
    %v618 = vrcp.pop %v617
    %v619 = vmul.f32 1.0, %v618
    %620 = vmatprep.subr.mxu0 0.0
    %621 = vmatpush1.msra.mxu0 %v543
    %622 = vmatprep.subr.mxu0 0.0
    %623 = vmatpush1.msra.mxu0 0.0
    %624 = vmatprep.subr.mxu0 0.0
    %625 = vmatpush1.msra.mxu0 0.0
    %626 = vmatprep.subr.mxu0 0.0
    %627 = vmatpush1.msra.mxu0 0.0
    %628 = vmatprep.subr.mxu0 0.0
    %629 = vmatpush1.msra.mxu0 0.0
    %630 = vmatprep.subr.mxu0 0.0
    %631 = vmatpush1.msra.mxu0 0.0
    %632 = vmatprep.subr.mxu0 0.0
    %633 = vmatpush1.msra.mxu0 0.0
    %634 = vmatprep.subr.mxu0 0.0
    %635 = vmatpush1.msra.mxu0 0.0
    %636 = vmatprep.subr.mxu0 0.0
    %637 = vmatpush1.msra.mxu0 0.0
    %638 = vmatprep.subr.mxu0 0.0
    %639 = vmatpush1.msra.mxu0 0.0
    %640 = vmatprep.subr.mxu0 0.0
    %641 = vmatpush1.msra.mxu0 0.0
    %642 = vmatprep.subr.mxu0 0.0
    %643 = vmatpush1.msra.mxu0 0.0
    %644 = vmatprep.subr.mxu0 0.0
    %645 = vmatpush1.msra.mxu0 0.0
    %646 = vmatprep.subr.mxu0 0.0
    %647 = vmatpush1.msra.mxu0 0.0
    %648 = vmatprep.subr.mxu0 0.0
    %649 = vmatpush1.msra.mxu0 0.0
    %650 = vmatprep.subr.mxu0 0.0
    %651 = vmatpush1.msra.mxu0 0.0
    %652 = vmatprep.subr.mxu0 0.0
    %653 = vmatpush1.msra.mxu0 0.0
    %654 = vmatprep.subr.mxu0 0.0
    %655 = vmatpush1.msra.mxu0 0.0
    %656 = vmatprep.subr.mxu0 0.0
    %657 = vmatpush1.msra.mxu0 0.0
    %658 = vmatprep.subr.mxu0 0.0
    %659 = vmatpush1.msra.mxu0 0.0
    %660 = vmatprep.subr.mxu0 0.0
    %661 = vmatpush1.msra.mxu0 0.0
    %662 = vmatprep.subr.mxu0 0.0
    %663 = vmatpush1.msra.mxu0 0.0
    %664 = vmatprep.subr.mxu0 0.0
    %665 = vmatpush1.msra.mxu0 0.0
    %666 = vmatprep.subr.mxu0 0.0
    %667 = vmatpush1.msra.mxu0 0.0
    %668 = vmatprep.subr.mxu0 0.0
    %669 = vmatpush1.msra.mxu0 0.0
    %670 = vmatprep.subr.mxu0 0.0
    %671 = vmatpush1.msra.mxu0 0.0
    %672 = vmatprep.subr.mxu0 0.0
    %673 = vmatpush1.msra.mxu0 0.0
    %674 = vmatprep.subr.mxu0 0.0
    %675 = vmatpush1.msra.mxu0 0.0
    %676 = vmatprep.subr.mxu0 0.0
    %677 = vmatpush1.msra.mxu0 0.0
    %678 = vmatprep.subr.mxu0 0.0
    %679 = vmatpush1.msra.mxu0 0.0
    %680 = vmatprep.subr.mxu0 0.0
    %681 = vmatpush1.msra.mxu0 0.0
    %682 = vmatprep.subr.mxu0 0.0
    %683 = vmatpush1.msra.mxu0 0.0
    %684 = vmatprep.mubr.f32.mxu0 0.0
    %685 = vmatmul.mubr.f32.gmra.mrb[0].mxu0 %v386
    %v686 = vpop.f32.mrb[0].mxu0
    %v687 = vadd.f32 %v383, %v686
    %v688 = vpop.f32.mrb[0].mxu0
    %689 = vdwg.mxu0
    %v690 = vxor.u32 %v687, 2147483648
    %v691 = vmul.f32 %v690, 1.442695
    %v692 = vpow.pop %v691
    %v693 = vadd.f32 %v692, 1.0
    %v694 = vrcp.pop %v693
    %v695 = vmul.f32 1.0, %v694
    %v697 = vrot.slane %v619, 4
    %v699 = vsel %vm204, %v379, %v697
    %v701 = vrot.slane %v695, 4
    %v703 = vsel %vm204, %v463, %v701
    %v704 = vld [vmem:[#allocation2] sm:$0xff]
    %v705 = vld [vmem:[#allocation2 + $0x8] sm:$0xff]
    %v706 = vld [vmem:[#allocation2 + $0x10] sm:$0xff]
    %v707 = vld [vmem:[#allocation2 + $0x18] sm:$0xff]
    %v708 = vld [vmem:[#allocation2 + $0x20] sm:$0xff]
    %v709 = vld [vmem:[#allocation2 + $0x28] sm:$0xff]
    %v710 = vld [vmem:[#allocation2 + $0x30] sm:$0xff]
    %v711 = vld [vmem:[#allocation2 + $0x38] sm:$0xff]
    %vm712 = vcmask 261120
    %v714 = vsel %vm712, %v699, 0
    %716 = vmatprep.subr.mxu0 %v705
    %717 = vmatpush1.msra.mxu0 %v704
    %718 = vmatprep.subr.mxu0 %v707
    %719 = vmatpush1.msra.mxu0 %v706
    %720 = vmatprep.subr.mxu0 %v709
    %721 = vmatpush1.msra.mxu0 %v708
    %722 = vmatprep.subr.mxu0 %v711
    %723 = vmatpush1.msra.mxu0 %v710
    %724 = vmatprep.subr.mxu0 0.0
    %725 = vmatpush1.msra.mxu0 0.0
    %726 = vmatprep.subr.mxu0 0.0
    %727 = vmatpush1.msra.mxu0 0.0
    %728 = vmatprep.subr.mxu0 0.0
    %729 = vmatpush1.msra.mxu0 0.0
    %730 = vmatprep.subr.mxu0 0.0
    %731 = vmatpush1.msra.mxu0 0.0
    %732 = vmatprep.subr.mxu0 0.0
    %733 = vmatpush1.msra.mxu0 0.0
    %734 = vmatprep.subr.mxu0 0.0
    %735 = vmatpush1.msra.mxu0 0.0
    %736 = vmatprep.subr.mxu0 0.0
    %737 = vmatpush1.msra.mxu0 0.0
    %738 = vmatprep.subr.mxu0 0.0
    %739 = vmatpush1.msra.mxu0 0.0
    %740 = vmatprep.subr.mxu0 0.0
    %741 = vmatpush1.msra.mxu0 0.0
    %742 = vmatprep.subr.mxu0 0.0
    %743 = vmatpush1.msra.mxu0 0.0
    %744 = vmatprep.subr.mxu0 0.0
    %745 = vmatpush1.msra.mxu0 0.0
    %746 = vmatprep.subr.mxu0 0.0
    %747 = vmatpush1.msra.mxu0 0.0
    %748 = vmatprep.subr.mxu0 0.0
    %749 = vmatpush1.msra.mxu0 0.0
    %750 = vmatprep.subr.mxu0 0.0
    %751 = vmatpush1.msra.mxu0 0.0
    %752 = vmatprep.subr.mxu0 0.0
    %753 = vmatpush1.msra.mxu0 0.0
    %754 = vmatprep.subr.mxu0 0.0
    %755 = vmatpush1.msra.mxu0 0.0
    %756 = vmatprep.subr.mxu0 0.0
    %757 = vmatpush1.msra.mxu0 0.0
    %758 = vmatprep.subr.mxu0 0.0
    %759 = vmatpush1.msra.mxu0 0.0
    %760 = vmatprep.subr.mxu0 0.0
    %761 = vmatpush1.msra.mxu0 0.0
    %762 = vmatprep.subr.mxu0 0.0
    %763 = vmatpush1.msra.mxu0 0.0
    %764 = vmatprep.subr.mxu0 0.0
    %765 = vmatpush1.msra.mxu0 0.0
    %766 = vmatprep.subr.mxu0 0.0
    %767 = vmatpush1.msra.mxu0 0.0
    %768 = vmatprep.subr.mxu0 0.0
    %769 = vmatpush1.msra.mxu0 0.0
    %770 = vmatprep.subr.mxu0 0.0
    %771 = vmatpush1.msra.mxu0 0.0
    %772 = vmatprep.subr.mxu0 0.0
    %773 = vmatpush1.msra.mxu0 0.0
    %774 = vmatprep.subr.mxu0 0.0
    %775 = vmatpush1.msra.mxu0 0.0
    %776 = vmatprep.subr.mxu0 0.0
    %777 = vmatpush1.msra.mxu0 0.0
    %778 = vmatprep.subr.mxu0 0.0
    %779 = vmatpush1.msra.mxu0 0.0
    %780 = vmatprep.mubr.f32.mxu0 0.0
    %781 = vmatmul.mubr.f32.gmra.mrb[0].mxu0 %v714
    %v782 = vpop.f32.mrb[0].mxu0
    %v783 = vadd.f32 0.0, %v782
    %v784 = vpop.f32.mrb[0].mxu0
    %v785 = vadd.f32 0.0, %v784
    %786 = vdwg.mxu0
    %v787 = vld [vmem:[#allocation4] sm:$0xff]
    %v788 = vld [vmem:[#allocation4 + $0x8] sm:$0xff]
    %v789 = vld [vmem:[#allocation4 + $0x10] sm:$0xff]
    %v790 = vld [vmem:[#allocation4 + $0x18] sm:$0xff]
    %v791 = vld [vmem:[#allocation4 + $0x20] sm:$0xff]
    %v792 = vld [vmem:[#allocation4 + $0x28] sm:$0xff]
    %v793 = vld [vmem:[#allocation4 + $0x30] sm:$0xff]
    %v794 = vld [vmem:[#allocation4 + $0x38] sm:$0xff]
    %v796 = vsel %vm712, %v703, 0
    %798 = vmatprep.subr.mxu0 %v788
    %799 = vmatpush1.msra.mxu0 %v787
    %800 = vmatprep.subr.mxu0 %v790
    %801 = vmatpush1.msra.mxu0 %v789
    %802 = vmatprep.subr.mxu0 %v792
    %803 = vmatpush1.msra.mxu0 %v791
    %804 = vmatprep.subr.mxu0 %v794
    %805 = vmatpush1.msra.mxu0 %v793
    %806 = vmatprep.subr.mxu0 0.0
    %807 = vmatpush1.msra.mxu0 0.0
    %808 = vmatprep.subr.mxu0 0.0
    %809 = vmatpush1.msra.mxu0 0.0
    %810 = vmatprep.subr.mxu0 0.0
    %811 = vmatpush1.msra.mxu0 0.0
    %812 = vmatprep.subr.mxu0 0.0
    %813 = vmatpush1.msra.mxu0 0.0
    %814 = vmatprep.subr.mxu0 0.0
    %815 = vmatpush1.msra.mxu0 0.0
    %816 = vmatprep.subr.mxu0 0.0
    %817 = vmatpush1.msra.mxu0 0.0
    %818 = vmatprep.subr.mxu0 0.0
    %819 = vmatpush1.msra.mxu0 0.0
    %820 = vmatprep.subr.mxu0 0.0
    %821 = vmatpush1.msra.mxu0 0.0
    %822 = vmatprep.subr.mxu0 0.0
    %823 = vmatpush1.msra.mxu0 0.0
    %824 = vmatprep.subr.mxu0 0.0
    %825 = vmatpush1.msra.mxu0 0.0
    %826 = vmatprep.subr.mxu0 0.0
    %827 = vmatpush1.msra.mxu0 0.0
    %828 = vmatprep.subr.mxu0 0.0
    %829 = vmatpush1.msra.mxu0 0.0
    %830 = vmatprep.subr.mxu0 0.0
    %831 = vmatpush1.msra.mxu0 0.0
    %832 = vmatprep.subr.mxu0 0.0
    %833 = vmatpush1.msra.mxu0 0.0
    %834 = vmatprep.subr.mxu0 0.0
    %835 = vmatpush1.msra.mxu0 0.0
    %836 = vmatprep.subr.mxu0 0.0
    %837 = vmatpush1.msra.mxu0 0.0
    %838 = vmatprep.subr.mxu0 0.0
    %839 = vmatpush1.msra.mxu0 0.0
    %840 = vmatprep.subr.mxu0 0.0
    %841 = vmatpush1.msra.mxu0 0.0
    %842 = vmatprep.subr.mxu0 0.0
    %843 = vmatpush1.msra.mxu0 0.0
    %844 = vmatprep.subr.mxu0 0.0
    %845 = vmatpush1.msra.mxu0 0.0
    %846 = vmatprep.subr.mxu0 0.0
    %847 = vmatpush1.msra.mxu0 0.0
    %848 = vmatprep.subr.mxu0 0.0
    %849 = vmatpush1.msra.mxu0 0.0
    %850 = vmatprep.subr.mxu0 0.0
    %851 = vmatpush1.msra.mxu0 0.0
    %852 = vmatprep.subr.mxu0 0.0
    %853 = vmatpush1.msra.mxu0 0.0
    %854 = vmatprep.subr.mxu0 0.0
    %855 = vmatpush1.msra.mxu0 0.0
    %856 = vmatprep.subr.mxu0 0.0
    %857 = vmatpush1.msra.mxu0 0.0
    %858 = vmatprep.subr.mxu0 0.0
    %859 = vmatpush1.msra.mxu0 0.0
    %860 = vmatprep.subr.mxu0 0.0
    %861 = vmatpush1.msra.mxu0 0.0
    %862 = vmatprep.mubr.f32.mxu0 0.0
    %863 = vmatmul.mubr.f32.gmra.mrb[0].mxu0 %v796
    %v864 = vpop.f32.mrb[0].mxu0
    %v865 = vadd.f32 0.0, %v864
    %v866 = vpop.f32.mrb[0].mxu0
    %v867 = vadd.f32 0.0, %v866
    %868 = vdwg.mxu0
    %v869 = vmul.f32 %v783, %v865
    %v870 = vmul.f32 %v785, %v867
    %v871 = vmul.f32 %v89, %v869
    %v872 = vmul.f32 %v90, %v870
    %873 = vst [vmem:[%s11] sm:$0xff] %v871
    %874 = vst [vmem:[%s11 + $0x8] sm:$0xff] %v872
    // Predicated region
    $region62: #{coord_attention.1} parent=1 // pred_check
      _
    $region63: #{coord_attention.1} parent=1 // pred_check_branch
      %876 = sbr.rel (0) target = $region65
    $region64: #{coord_attention.1} parent=1 // pred_region
      _
    $region65: #{coord_attention.1} parent=1 // pred_fallthru
      _
    // Predicated region
    $region66: #{coord_attention.1} parent=1 // pred_check
      _
    $region67: #{coord_attention.1} parent=1 // pred_check_branch
      %878 = sbr.rel (0) target = $region69
    $region68: #{coord_attention.1} parent=1 // pred_region
      _
    $region69: #{coord_attention.1} parent=1 // pred_fallthru
      _
    %879 = vsyncpa [#allocation3], 1
    %880 = vsyncpa [#allocation5], 1
    %881 = vsyncpa [#allocation8], 1

</llo_original>
